<compile_context>
chip_gen: v7x
topology: tpu7x:2x2x1
jax: 0.10.0
libtpu: 0.0.40
codegen_flags: <defaults>
</compile_context>

<pallas_src>
import functools

import numpy as np
import jax
import jax.numpy as jnp
from jax.experimental import pallas as pl
from jax.experimental.pallas import tpu as pltpu

NUM_CLASSES = 15
IGNORE_INDEX = 13
LANES = 128

# Deterministic class weights straight from the module's __init__ (baked in as Python
# floats -> scalar immediates inside the kernel, no weight tensor / broadcast needed).
CLASS_WEIGHT_SEMANTIC = (
    10.2249, 9.6609, 32.8497, 6.0635, 48.1396, 44.9108, 4.4491, 3.1748,
    43.9271, 15.9236, 43.1266, 44.8469, 48.6038, 50.4826, 27.1057)


def _wce_kernel(x_ref, t_ref, num_ref, den_ref, num_acc, den_acc, *,
                class_weights, s_total, tile_s, tiles_per_chunk):
    """One grid step: image n (axis 0) x S-chunk c (axis 1) x tile j (axis 2).

    x_ref : (1, C, tile_s, 128) logits (f32 or bf16)
    t_ref : (1, 1, tile_s, 128) targets (int8 or int32)
    num_ref/den_ref : (1, 1, 128) lane-dense partials per (image, chunk)
    num_acc/den_acc : (acc_rows, 128) f32 scratch accumulators
    """
    chunk = pl.program_id(1)
    j = pl.program_id(2)
    num_classes = len(class_weights)

    @pl.when(j == 0)
    def _():
        num_acc[...] = jnp.zeros_like(num_acc)
        den_acc[...] = jnp.zeros_like(den_acc)

    t = t_ref[0, 0].astype(jnp.int32)                       # (TS, 128)

    # Pass 1: running max over the class axis. Unrolled per-class slabs keep live
    # intermediates at (TS,128) f32 instead of materializing a (C,TS,128) f32 temp.
    m = x_ref[0, 0].astype(jnp.float32)
    for cc in range(1, num_classes):
        m = jnp.maximum(m, x_ref[0, cc].astype(jnp.float32))

    # Pass 2: sum-exp + one-hot gather of target logit / target weight.
    # One compare per class feeds both selects; class id and weight are scalar
    # immediates (no iota materialization, no broadcast_in_dim of the weights).
    se = jnp.zeros(t.shape, jnp.float32)
    x_t = jnp.zeros(t.shape, jnp.float32)
    w_t = jnp.zeros(t.shape, jnp.float32)
    for cc in range(num_classes):
        xc = x_ref[0, cc].astype(jnp.float32)
        se = se + jnp.exp(xc - m)
        if cc != IGNORE_INDEX:           # ignored-class pixels never contribute
            hit = t == cc
            x_t = jnp.where(hit, xc, x_t)
            w_t = jnp.where(hit, jnp.float32(class_weights[cc]), w_t)

    lse = jnp.log(se) + m                                    # (TS, 128)

    # Validity: real sublane rows of this (possibly ragged / clamped) tile AND not the
    # ignore class. rem <= 0 for the duplicated tile of an uneven chunk split, so it
    # contributes exactly zero. Selects (not multiplies) quarantine OOB garbage.
    abs_tile = chunk * tiles_per_chunk + j
    rem = s_total - abs_tile * tile_s
    row_ok = jax.lax.broadcasted_iota(jnp.int32, t.shape, 0) < rem
    valid = jnp.logical_and(row_ok, t != IGNORE_INDEX)

    nll = jnp.where(valid, lse - x_t, 0.0)                   # (TS, 128)
    w_eff = jnp.where(valid, w_t, 0.0)                       # (TS, 128)
    prod = w_eff * nll

    if tile_s % 8 == 0:
        # Fold (TS,128) -> (8,128): summing TS//8 whole vregs, pure sublane-aligned
        # VALU adds; removes the per-step (TS,128) scratch read-modify-write.
        num_acc[...] += prod.reshape(tile_s // 8, 8, LANES).sum(axis=0)
        den_acc[...] += w_eff.reshape(tile_s // 8, 8, LANES).sum(axis=0)
    else:
        num_acc[...] += prod
        den_acc[...] += w_eff

    @pl.when(j == pl.num_programs(2) - 1)
    def _():
        # Single cross-sublane reduce per (image, chunk); the tiny final reduce +
        # divide is finished in f32 in the wrapper. Outputs stay 128-lane dense.
        num_ref[...] = jnp.sum(num_acc[...], axis=0, keepdims=True)[None]
        den_ref[...] = jnp.sum(den_acc[...], axis=0, keepdims=True)[None]


def weighted_cross_entropy_loss(logits_nchw, targets_nhw,
                                class_weights=CLASS_WEIGHT_SEMANTIC,
                                tile_pixels: int = 65536,
                                s_chunks=None):
    """Pallas implementation of train_Loss.forward (weighted CE, ignore_index=13)."""
    N, C, H, W = logits_nchw.shape
    weights = tuple(float(v) for v in np.asarray(class_weights, dtype=np.float32))
    assert len(weights) == C
    HW = H * W

    x = logits_nchw
    if x.dtype not in (jnp.float32, jnp.bfloat16):
        x = x.astype(jnp.float32)
    x = x.reshape(N, C, HW)                         # free reshape (NCHW contiguous)
    t = targets_nhw.astype(jnp.int32).reshape(N, 1, HW)

    # Pixel count must be a multiple of 128 to put pixels on the lane axis; typical
    # segmentation shapes already are, so this pad is a no-op in the common case.
    hw_pad = int(pl.cdiv(HW, LANES)) * LANES
    if hw_pad != HW:
        x = jnp.pad(x, ((0, 0), (0, 0), (0, hw_pad - HW)))
        t = jnp.pad(t, ((0, 0), (0, 0), (0, hw_pad - HW)),
                    constant_values=IGNORE_INDEX)
    S = hw_pad // LANES
    x = x.reshape(N, C, S, LANES)
    t = t.reshape(N, 1, S, LANES)

    # ~64K pixels per step by default (tile_s = 512): f32 logits tile = 3.75 MiB,
    # ~8 MiB double-buffered + ~3 MiB live temps -> fits v5e's 16 MiB scoped default
    # and is well inside v6e/v7x budgets. Raise tile_pixels on v6e/v7x if desired.
    tile_s = max(8, (tile_pixels // LANES) // 8 * 8)
    if S <= tile_s:
        tile_s = S                 # single S tile; "equal full dim" satisfies tiling rule
    n_total_tiles = int(pl.cdiv(S, tile_s))

    # 2-way S-chunk split (extra "parallel" grid axis) so both v7x TensorCores stay busy
    # when N is 1 / odd; no effect on single-TC v5e/v6e beyond a fully-masked spare tile.
    if s_chunks is None:
        s_chunks = 2 if (N % 2 == 1) else 1
    n_chunks = max(1, min(int(s_chunks), n_total_tiles))
    tiles_per_chunk = int(pl.cdiv(n_total_tiles, n_chunks))

    # int8 targets in HBM when the tile is (32,128)-aligned (int8 min tile); the kernel
    # upcasts to int32 for the compares either way.
    if tile_s % 32 == 0:
        t = t.astype(jnp.int8)

    acc_rows = 8 if tile_s % 8 == 0 else tile_s

    # Only set an explicit VMEM limit when a caller asks for tiles beyond the default
    # scoped budget (e.g. tile_s=1024 on v6e/v7x).
    io_bytes = 2 * (C * tile_s * LANES * x.dtype.itemsize
                    + tile_s * LANES * t.dtype.itemsize)        # double-buffered inputs
    temp_bytes = 10 * tile_s * LANES * 4                        # live f32 slabs in-kernel
    vmem_needed = io_bytes + temp_bytes + (1 << 20)
    vmem_limit = None
    if vmem_needed > 14 * 1024 * 1024:
        vmem_limit = min(int(vmem_needed * 1.25), 112 * 1024 * 1024)

    def x_map(n, c, j):
        tile = jnp.minimum(c * tiles_per_chunk + j, n_total_tiles - 1)
        return (n, 0, tile, 0)

    def t_map(n, c, j):
        tile = jnp.minimum(c * tiles_per_chunk + j, n_total_tiles - 1)
        return (n, 0, tile, 0)

    def o_map(n, c, j):
        return (n * n_chunks + c, 0, 0)

    kernel = functools.partial(
        _wce_kernel, class_weights=weights, s_total=S, tile_s=tile_s,
        tiles_per_chunk=tiles_per_chunk)

    num_part, den_part = pl.pallas_call(
        kernel,
        out_shape=(jax.ShapeDtypeStruct((N * n_chunks, 1, LANES), jnp.float32),
                   jax.ShapeDtypeStruct((N * n_chunks, 1, LANES), jnp.float32)),
        grid_spec=pltpu.PrefetchScalarGridSpec(
            num_scalar_prefetch=0,
            grid=(N, n_chunks, tiles_per_chunk),
            in_specs=[
                pl.BlockSpec((1, C, tile_s, LANES), x_map),   # logits tile
                pl.BlockSpec((1, 1, tile_s, LANES), t_map),   # targets tile
            ],
            out_specs=(
                pl.BlockSpec((1, 1, LANES), o_map),           # per-(image,chunk) num
                pl.BlockSpec((1, 1, LANES), o_map),           # per-(image,chunk) den
            ),
            scratch_shapes=[
                pltpu.VMEM((acc_rows, LANES), jnp.float32),   # numerator accumulator
                pltpu.VMEM((acc_rows, LANES), jnp.float32),   # denominator accumulator
            ],
        ),
        compiler_params=pltpu.CompilerParams(
            # batch and S-chunk axes parallel (v7x megacore); tile axis is the reduction
            dimension_semantics=("parallel", "parallel", "arbitrary"),
            vmem_limit_bytes=vmem_limit),
    )(x, t)

    # Tiny final f32 reduce + divide (NaN iff every pixel is ignore_index, as in PyTorch).
    return jnp.sum(num_part) / jnp.sum(den_part)


def _reference_loss(logits_nchw, targets_nhw, class_weights):
    """Plain-JAX reference mirroring torch.nn.CrossEntropyLoss(weight, ignore_index=13)."""
    C = logits_nchw.shape[1]
    x = jnp.transpose(logits_nchw, (0, 2, 3, 1)).reshape(-1, C).astype(jnp.float32)
    t = targets_nhw.reshape(-1).astype(jnp.int32)
    logp = jax.nn.log_softmax(x, axis=-1)
    nll = -jnp.take_along_axis(logp, t[:, None], axis=-1)[:, 0]
    w_t = jnp.asarray(class_weights, jnp.float32)[t]
    valid = (t != IGNORE_INDEX).astype(jnp.float32)
    return jnp.sum(valid * w_t * nll) / jnp.sum(valid * w_t)


if __name__ == "__main__":
    base_key = jax.random.PRNGKey(0)

    def check(n, h, w, dtype, tile_pixels, tag):
        k1, k2 = jax.random.split(jax.random.fold_in(base_key, n * 100003 + h * 131 + w))
        logits = jax.random.normal(k1, (n, NUM_CLASSES, h, w),
                                   dtype=jnp.float32).astype(dtype)
        targets = jax.random.randint(k2, (n, h, w), 0, NUM_CLASSES,
                                     dtype=jnp.int32)  # includes ignore_index=13 pixels
        loss = weighted_cross_entropy_loss(logits, targets, tile_pixels=tile_pixels)
        loss = jax.block_until_ready(loss)
        ref = _reference_loss(logits, targets, CLASS_WEIGHT_SEMANTIC)
        assert jnp.allclose(loss, ref, rtol=2e-4, atol=2e-4), (tag, loss, ref)

    # Small module-consistent shape: single S tile, tile_s = S = 2, non-folded accumulator.
    check(2, 16, 16, jnp.float32, 65536, "small")
    # Multi-tile + ragged HW pad + ragged tail + odd N -> 2-way S-chunk split with a
    # clamped (fully masked) spare tile in the last chunk.
    check(3, 40, 52, jnp.float32, 1024, "multitile_ragged")
    # bf16 logits + int8 targets (tile_s = 32) + N=1 -> S-chunk split keeps both v7x TCs busy.
    check(1, 128, 96, jnp.bfloat16, 4096, "bf16_int8_n1")

    print("KERNEL_OK")
</pallas_src>

<mosaic_0001>
module attributes {stable_mosaic.version = 11 : i64} {
  func.func @_wce_kernel(%arg0: i32, %arg1: i32, %arg2: i32, %arg3: memref<1x15x2x128xf32, #tpu.memory_space<vmem>>, %arg4: memref<1x1x2x128xi32, #tpu.memory_space<vmem>>, %arg5: memref<1x1x128xf32, #tpu.memory_space<vmem>>, %arg6: memref<1x1x128xf32, #tpu.memory_space<vmem>>, %arg7: memref<2x128xf32, #tpu.memory_space<vmem>>, %arg8: memref<2x128xf32, #tpu.memory_space<vmem>>) attributes {dimension_semantics = [#tpu.dimension_semantics<parallel>, #tpu.dimension_semantics<parallel>, #tpu.dimension_semantics<arbitrary>], iteration_bounds = array<i64: 2, 1, 1>, scalar_prefetch = 0 : i64, scratch_operands = 2 : i64, tpu.core_type = #tpu.core_type<tc>, window_params = [{transform_indices = @transform_0, window_bounds = array<i64: 1, 15, 2, 128>}, {transform_indices = @transform_1, window_bounds = array<i64: 1, 1, 2, 128>}, {transform_indices = @transform_2, window_bounds = array<i64: 1, 1, 128>}, {transform_indices = @transform_3, window_bounds = array<i64: 1, 1, 128>}]} {
    %c0_i32 = arith.constant 0 : i32
    %0 = arith.cmpi eq, %arg2, %c0_i32 : i32
    %1 = arith.extui %0 : i1 to i32
    %c0_i32_0 = arith.constant 0 : i32
    %2 = arith.cmpi ne, %1, %c0_i32_0 : i32
    scf.if %2 {
      %cst_142 = arith.constant 0.000000e+00 : f32
      %224 = vector.broadcast %cst_142 : f32 to vector<2x128xf32>
      %c0_143 = arith.constant 0 : index
      %c0_144 = arith.constant 0 : index
      %225 = vector.load %arg7[%c0_143, %c0_144] : memref<2x128xf32, #tpu.memory_space<vmem>>, vector<2x128xf32>
      tpu.vector_store %arg7[%c0_143, %c0_144], %224 {strides = array<i32>} : memref<2x128xf32, #tpu.memory_space<vmem>>, vector<2x128xf32>,
      %cst_145 = arith.constant 0.000000e+00 : f32
      %226 = vector.broadcast %cst_145 : f32 to vector<2x128xf32>
      %c0_146 = arith.constant 0 : index
      %c0_147 = arith.constant 0 : index
      %227 = vector.load %arg8[%c0_146, %c0_147] : memref<2x128xf32, #tpu.memory_space<vmem>>, vector<2x128xf32>
      tpu.vector_store %arg8[%c0_146, %c0_147], %226 {strides = array<i32>} : memref<2x128xf32, #tpu.memory_space<vmem>>, vector<2x128xf32>,
    } else {
    }
    %c0 = arith.constant 0 : index
    %c0_1 = arith.constant 0 : index
    %c0_2 = arith.constant 0 : index
    %c0_3 = arith.constant 0 : index
    %3 = vector.load %arg4[%c0, %c0_1, %c0_2, %c0_3] : memref<1x1x2x128xi32, #tpu.memory_space<vmem>>, vector<1x1x2x128xi32>
    %4 = vector.shape_cast %3 : vector<1x1x2x128xi32> to vector<2x128xi32>
    %c0_4 = arith.constant 0 : index
    %c0_5 = arith.constant 0 : index
    %c0_6 = arith.constant 0 : index
    %c0_7 = arith.constant 0 : index
    %5 = vector.load %arg3[%c0_4, %c0_5, %c0_6, %c0_7] : memref<1x15x2x128xf32, #tpu.memory_space<vmem>>, vector<1x1x2x128xf32>
    %6 = vector.shape_cast %5 : vector<1x1x2x128xf32> to vector<2x128xf32>
    %c0_8 = arith.constant 0 : index
    %c1 = arith.constant 1 : index
    %c0_9 = arith.constant 0 : index
    %c0_10 = arith.constant 0 : index
    %7 = vector.load %arg3[%c0_8, %c1, %c0_9, %c0_10] : memref<1x15x2x128xf32, #tpu.memory_space<vmem>>, vector<1x1x2x128xf32>
    %8 = vector.shape_cast %7 : vector<1x1x2x128xf32> to vector<2x128xf32>
    %9 = arith.maximumf %6, %8 : vector<2x128xf32>
    %c0_11 = arith.constant 0 : index
    %c2 = arith.constant 2 : index
    %c0_12 = arith.constant 0 : index
    %c0_13 = arith.constant 0 : index
    %10 = vector.load %arg3[%c0_11, %c2, %c0_12, %c0_13] : memref<1x15x2x128xf32, #tpu.memory_space<vmem>>, vector<1x1x2x128xf32>
    %11 = vector.shape_cast %10 : vector<1x1x2x128xf32> to vector<2x128xf32>
    %12 = arith.maximumf %9, %11 : vector<2x128xf32>
    %c0_14 = arith.constant 0 : index
    %c3 = arith.constant 3 : index
    %c0_15 = arith.constant 0 : index
    %c0_16 = arith.constant 0 : index
    %13 = vector.load %arg3[%c0_14, %c3, %c0_15, %c0_16] : memref<1x15x2x128xf32, #tpu.memory_space<vmem>>, vector<1x1x2x128xf32>
    %14 = vector.shape_cast %13 : vector<1x1x2x128xf32> to vector<2x128xf32>
    %15 = arith.maximumf %12, %14 : vector<2x128xf32>
    %c0_17 = arith.constant 0 : index
    %c4 = arith.constant 4 : index
    %c0_18 = arith.constant 0 : index
    %c0_19 = arith.constant 0 : index
    %16 = vector.load %arg3[%c0_17, %c4, %c0_18, %c0_19] : memref<1x15x2x128xf32, #tpu.memory_space<vmem>>, vector<1x1x2x128xf32>
    %17 = vector.shape_cast %16 : vector<1x1x2x128xf32> to vector<2x128xf32>
    %18 = arith.maximumf %15, %17 : vector<2x128xf32>
    %c0_20 = arith.constant 0 : index
    %c5 = arith.constant 5 : index
    %c0_21 = arith.constant 0 : index
    %c0_22 = arith.constant 0 : index
    %19 = vector.load %arg3[%c0_20, %c5, %c0_21, %c0_22] : memref<1x15x2x128xf32, #tpu.memory_space<vmem>>, vector<1x1x2x128xf32>
    %20 = vector.shape_cast %19 : vector<1x1x2x128xf32> to vector<2x128xf32>
    %21 = arith.maximumf %18, %20 : vector<2x128xf32>
    %c0_23 = arith.constant 0 : index
    %c6 = arith.constant 6 : index
    %c0_24 = arith.constant 0 : index
    %c0_25 = arith.constant 0 : index
    %22 = vector.load %arg3[%c0_23, %c6, %c0_24, %c0_25] : memref<1x15x2x128xf32, #tpu.memory_space<vmem>>, vector<1x1x2x128xf32>
    %23 = vector.shape_cast %22 : vector<1x1x2x128xf32> to vector<2x128xf32>
    %24 = arith.maximumf %21, %23 : vector<2x128xf32>
    %c0_26 = arith.constant 0 : index
    %c7 = arith.constant 7 : index
    %c0_27 = arith.constant 0 : index
    %c0_28 = arith.constant 0 : index
    %25 = vector.load %arg3[%c0_26, %c7, %c0_27, %c0_28] : memref<1x15x2x128xf32, #tpu.memory_space<vmem>>, vector<1x1x2x128xf32>
    %26 = vector.shape_cast %25 : vector<1x1x2x128xf32> to vector<2x128xf32>
    %27 = arith.maximumf %24, %26 : vector<2x128xf32>
    %c0_29 = arith.constant 0 : index
    %c8 = arith.constant 8 : index
    %c0_30 = arith.constant 0 : index
    %c0_31 = arith.constant 0 : index
    %28 = vector.load %arg3[%c0_29, %c8, %c0_30, %c0_31] : memref<1x15x2x128xf32, #tpu.memory_space<vmem>>, vector<1x1x2x128xf32>
    %29 = vector.shape_cast %28 : vector<1x1x2x128xf32> to vector<2x128xf32>
    %30 = arith.maximumf %27, %29 : vector<2x128xf32>
    %c0_32 = arith.constant 0 : index
    %c9 = arith.constant 9 : index
    %c0_33 = arith.constant 0 : index
    %c0_34 = arith.constant 0 : index
    %31 = vector.load %arg3[%c0_32, %c9, %c0_33, %c0_34] : memref<1x15x2x128xf32, #tpu.memory_space<vmem>>, vector<1x1x2x128xf32>
    %32 = vector.shape_cast %31 : vector<1x1x2x128xf32> to vector<2x128xf32>
    %33 = arith.maximumf %30, %32 : vector<2x128xf32>
    %c0_35 = arith.constant 0 : index
    %c10 = arith.constant 10 : index
    %c0_36 = arith.constant 0 : index
    %c0_37 = arith.constant 0 : index
    %34 = vector.load %arg3[%c0_35, %c10, %c0_36, %c0_37] : memref<1x15x2x128xf32, #tpu.memory_space<vmem>>, vector<1x1x2x128xf32>
    %35 = vector.shape_cast %34 : vector<1x1x2x128xf32> to vector<2x128xf32>
    %36 = arith.maximumf %33, %35 : vector<2x128xf32>
    %c0_38 = arith.constant 0 : index
    %c11 = arith.constant 11 : index
    %c0_39 = arith.constant 0 : index
    %c0_40 = arith.constant 0 : index
    %37 = vector.load %arg3[%c0_38, %c11, %c0_39, %c0_40] : memref<1x15x2x128xf32, #tpu.memory_space<vmem>>, vector<1x1x2x128xf32>
    %38 = vector.shape_cast %37 : vector<1x1x2x128xf32> to vector<2x128xf32>
    %39 = arith.maximumf %36, %38 : vector<2x128xf32>
    %c0_41 = arith.constant 0 : index
    %c12 = arith.constant 12 : index
    %c0_42 = arith.constant 0 : index
    %c0_43 = arith.constant 0 : index
    %40 = vector.load %arg3[%c0_41, %c12, %c0_42, %c0_43] : memref<1x15x2x128xf32, #tpu.memory_space<vmem>>, vector<1x1x2x128xf32>
    %41 = vector.shape_cast %40 : vector<1x1x2x128xf32> to vector<2x128xf32>
    %42 = arith.maximumf %39, %41 : vector<2x128xf32>
    %c0_44 = arith.constant 0 : index
    %c13 = arith.constant 13 : index
    %c0_45 = arith.constant 0 : index
    %c0_46 = arith.constant 0 : index
    %43 = vector.load %arg3[%c0_44, %c13, %c0_45, %c0_46] : memref<1x15x2x128xf32, #tpu.memory_space<vmem>>, vector<1x1x2x128xf32>
    %44 = vector.shape_cast %43 : vector<1x1x2x128xf32> to vector<2x128xf32>
    %45 = arith.maximumf %42, %44 : vector<2x128xf32>
    %c0_47 = arith.constant 0 : index
    %c14 = arith.constant 14 : index
    %c0_48 = arith.constant 0 : index
    %c0_49 = arith.constant 0 : index
    %46 = vector.load %arg3[%c0_47, %c14, %c0_48, %c0_49] : memref<1x15x2x128xf32, #tpu.memory_space<vmem>>, vector<1x1x2x128xf32>
    %47 = vector.shape_cast %46 : vector<1x1x2x128xf32> to vector<2x128xf32>
    %48 = arith.maximumf %45, %47 : vector<2x128xf32>
    %cst = arith.constant 0.000000e+00 : f32
    %49 = vector.broadcast %cst : f32 to vector<2x128xf32>
    %cst_50 = arith.constant 0.000000e+00 : f32
    %50 = vector.broadcast %cst_50 : f32 to vector<2x128xf32>
    %cst_51 = arith.constant 0.000000e+00 : f32
    %51 = vector.broadcast %cst_51 : f32 to vector<2x128xf32>
    %c0_52 = arith.constant 0 : index
    %c0_53 = arith.constant 0 : index
    %c0_54 = arith.constant 0 : index
    %c0_55 = arith.constant 0 : index
    %52 = vector.load %arg3[%c0_52, %c0_53, %c0_54, %c0_55] : memref<1x15x2x128xf32, #tpu.memory_space<vmem>>, vector<1x1x2x128xf32>
    %53 = vector.shape_cast %52 : vector<1x1x2x128xf32> to vector<2x128xf32>
    %54 = arith.subf %53, %48 : vector<2x128xf32>
    %55 = math.exp %54 : vector<2x128xf32>
    %56 = arith.addf %49, %55 : vector<2x128xf32>
    %c0_i32_56 = arith.constant 0 : i32
    %57 = vector.broadcast %c0_i32_56 : i32 to vector<2x128xi32>
    %58 = arith.cmpi eq, %4, %57 : vector<2x128xi32>
    %59 = arith.select %58, %53, %50 : vector<2x128xi1>, vector<2x128xf32>
    %cst_57 = arith.constant 1.022490e+01 : f32
    %60 = vector.broadcast %cst_57 : f32 to vector<2x128xf32>
    %61 = arith.select %58, %60, %51 : vector<2x128xi1>, vector<2x128xf32>
    %c0_58 = arith.constant 0 : index
    %c1_59 = arith.constant 1 : index
    %c0_60 = arith.constant 0 : index
    %c0_61 = arith.constant 0 : index
    %62 = vector.load %arg3[%c0_58, %c1_59, %c0_60, %c0_61] : memref<1x15x2x128xf32, #tpu.memory_space<vmem>>, vector<1x1x2x128xf32>
    %63 = vector.shape_cast %62 : vector<1x1x2x128xf32> to vector<2x128xf32>
    %64 = arith.subf %63, %48 : vector<2x128xf32>
    %65 = math.exp %64 : vector<2x128xf32>
    %66 = arith.addf %56, %65 : vector<2x128xf32>
    %c1_i32 = arith.constant 1 : i32
    %67 = vector.broadcast %c1_i32 : i32 to vector<2x128xi32>
    %68 = arith.cmpi eq, %4, %67 : vector<2x128xi32>
    %69 = arith.select %68, %63, %59 : vector<2x128xi1>, vector<2x128xf32>
    %cst_62 = arith.constant 9.660900e+00 : f32
    %70 = vector.broadcast %cst_62 : f32 to vector<2x128xf32>
    %71 = arith.select %68, %70, %61 : vector<2x128xi1>, vector<2x128xf32>
    %c0_63 = arith.constant 0 : index
    %c2_64 = arith.constant 2 : index
    %c0_65 = arith.constant 0 : index
    %c0_66 = arith.constant 0 : index
    %72 = vector.load %arg3[%c0_63, %c2_64, %c0_65, %c0_66] : memref<1x15x2x128xf32, #tpu.memory_space<vmem>>, vector<1x1x2x128xf32>
    %73 = vector.shape_cast %72 : vector<1x1x2x128xf32> to vector<2x128xf32>
    %74 = arith.subf %73, %48 : vector<2x128xf32>
    %75 = math.exp %74 : vector<2x128xf32>
    %76 = arith.addf %66, %75 : vector<2x128xf32>
    %c2_i32 = arith.constant 2 : i32
    %77 = vector.broadcast %c2_i32 : i32 to vector<2x128xi32>
    %78 = arith.cmpi eq, %4, %77 : vector<2x128xi32>
    %79 = arith.select %78, %73, %69 : vector<2x128xi1>, vector<2x128xf32>
    %cst_67 = arith.constant 3.284970e+01 : f32
    %80 = vector.broadcast %cst_67 : f32 to vector<2x128xf32>
    %81 = arith.select %78, %80, %71 : vector<2x128xi1>, vector<2x128xf32>
    %c0_68 = arith.constant 0 : index
    %c3_69 = arith.constant 3 : index
    %c0_70 = arith.constant 0 : index
    %c0_71 = arith.constant 0 : index
    %82 = vector.load %arg3[%c0_68, %c3_69, %c0_70, %c0_71] : memref<1x15x2x128xf32, #tpu.memory_space<vmem>>, vector<1x1x2x128xf32>
    %83 = vector.shape_cast %82 : vector<1x1x2x128xf32> to vector<2x128xf32>
    %84 = arith.subf %83, %48 : vector<2x128xf32>
    %85 = math.exp %84 : vector<2x128xf32>
    %86 = arith.addf %76, %85 : vector<2x128xf32>
    %c3_i32 = arith.constant 3 : i32
    %87 = vector.broadcast %c3_i32 : i32 to vector<2x128xi32>
    %88 = arith.cmpi eq, %4, %87 : vector<2x128xi32>
    %89 = arith.select %88, %83, %79 : vector<2x128xi1>, vector<2x128xf32>
    %cst_72 = arith.constant 6.063500e+00 : f32
    %90 = vector.broadcast %cst_72 : f32 to vector<2x128xf32>
    %91 = arith.select %88, %90, %81 : vector<2x128xi1>, vector<2x128xf32>
    %c0_73 = arith.constant 0 : index
    %c4_74 = arith.constant 4 : index
    %c0_75 = arith.constant 0 : index
    %c0_76 = arith.constant 0 : index
    %92 = vector.load %arg3[%c0_73, %c4_74, %c0_75, %c0_76] : memref<1x15x2x128xf32, #tpu.memory_space<vmem>>, vector<1x1x2x128xf32>
    %93 = vector.shape_cast %92 : vector<1x1x2x128xf32> to vector<2x128xf32>
    %94 = arith.subf %93, %48 : vector<2x128xf32>
    %95 = math.exp %94 : vector<2x128xf32>
    %96 = arith.addf %86, %95 : vector<2x128xf32>
    %c4_i32 = arith.constant 4 : i32
    %97 = vector.broadcast %c4_i32 : i32 to vector<2x128xi32>
    %98 = arith.cmpi eq, %4, %97 : vector<2x128xi32>
    %99 = arith.select %98, %93, %89 : vector<2x128xi1>, vector<2x128xf32>
    %cst_77 = arith.constant 4.813960e+01 : f32
    %100 = vector.broadcast %cst_77 : f32 to vector<2x128xf32>
    %101 = arith.select %98, %100, %91 : vector<2x128xi1>, vector<2x128xf32>
    %c0_78 = arith.constant 0 : index
    %c5_79 = arith.constant 5 : index
    %c0_80 = arith.constant 0 : index
    %c0_81 = arith.constant 0 : index
    %102 = vector.load %arg3[%c0_78, %c5_79, %c0_80, %c0_81] : memref<1x15x2x128xf32, #tpu.memory_space<vmem>>, vector<1x1x2x128xf32>
    %103 = vector.shape_cast %102 : vector<1x1x2x128xf32> to vector<2x128xf32>
    %104 = arith.subf %103, %48 : vector<2x128xf32>
    %105 = math.exp %104 : vector<2x128xf32>
    %106 = arith.addf %96, %105 : vector<2x128xf32>
    %c5_i32 = arith.constant 5 : i32
    %107 = vector.broadcast %c5_i32 : i32 to vector<2x128xi32>
    %108 = arith.cmpi eq, %4, %107 : vector<2x128xi32>
    %109 = arith.select %108, %103, %99 : vector<2x128xi1>, vector<2x128xf32>
    %cst_82 = arith.constant 4.491080e+01 : f32
    %110 = vector.broadcast %cst_82 : f32 to vector<2x128xf32>
    %111 = arith.select %108, %110, %101 : vector<2x128xi1>, vector<2x128xf32>
    %c0_83 = arith.constant 0 : index
    %c6_84 = arith.constant 6 : index
    %c0_85 = arith.constant 0 : index
    %c0_86 = arith.constant 0 : index
    %112 = vector.load %arg3[%c0_83, %c6_84, %c0_85, %c0_86] : memref<1x15x2x128xf32, #tpu.memory_space<vmem>>, vector<1x1x2x128xf32>
    %113 = vector.shape_cast %112 : vector<1x1x2x128xf32> to vector<2x128xf32>
    %114 = arith.subf %113, %48 : vector<2x128xf32>
    %115 = math.exp %114 : vector<2x128xf32>
    %116 = arith.addf %106, %115 : vector<2x128xf32>
    %c6_i32 = arith.constant 6 : i32
    %117 = vector.broadcast %c6_i32 : i32 to vector<2x128xi32>
    %118 = arith.cmpi eq, %4, %117 : vector<2x128xi32>
    %119 = arith.select %118, %113, %109 : vector<2x128xi1>, vector<2x128xf32>
    %cst_87 = arith.constant 4.449100e+00 : f32
    %120 = vector.broadcast %cst_87 : f32 to vector<2x128xf32>
    %121 = arith.select %118, %120, %111 : vector<2x128xi1>, vector<2x128xf32>
    %c0_88 = arith.constant 0 : index
    %c7_89 = arith.constant 7 : index
    %c0_90 = arith.constant 0 : index
    %c0_91 = arith.constant 0 : index
    %122 = vector.load %arg3[%c0_88, %c7_89, %c0_90, %c0_91] : memref<1x15x2x128xf32, #tpu.memory_space<vmem>>, vector<1x1x2x128xf32>
    %123 = vector.shape_cast %122 : vector<1x1x2x128xf32> to vector<2x128xf32>
    %124 = arith.subf %123, %48 : vector<2x128xf32>
    %125 = math.exp %124 : vector<2x128xf32>
    %126 = arith.addf %116, %125 : vector<2x128xf32>
    %c7_i32 = arith.constant 7 : i32
    %127 = vector.broadcast %c7_i32 : i32 to vector<2x128xi32>
    %128 = arith.cmpi eq, %4, %127 : vector<2x128xi32>
    %129 = arith.select %128, %123, %119 : vector<2x128xi1>, vector<2x128xf32>
    %cst_92 = arith.constant 3.174800e+00 : f32
    %130 = vector.broadcast %cst_92 : f32 to vector<2x128xf32>
    %131 = arith.select %128, %130, %121 : vector<2x128xi1>, vector<2x128xf32>
    %c0_93 = arith.constant 0 : index
    %c8_94 = arith.constant 8 : index
    %c0_95 = arith.constant 0 : index
    %c0_96 = arith.constant 0 : index
    %132 = vector.load %arg3[%c0_93, %c8_94, %c0_95, %c0_96] : memref<1x15x2x128xf32, #tpu.memory_space<vmem>>, vector<1x1x2x128xf32>
    %133 = vector.shape_cast %132 : vector<1x1x2x128xf32> to vector<2x128xf32>
    %134 = arith.subf %133, %48 : vector<2x128xf32>
    %135 = math.exp %134 : vector<2x128xf32>
    %136 = arith.addf %126, %135 : vector<2x128xf32>
    %c8_i32 = arith.constant 8 : i32
    %137 = vector.broadcast %c8_i32 : i32 to vector<2x128xi32>
    %138 = arith.cmpi eq, %4, %137 : vector<2x128xi32>
    %139 = arith.select %138, %133, %129 : vector<2x128xi1>, vector<2x128xf32>
    %cst_97 = arith.constant 4.392710e+01 : f32
    %140 = vector.broadcast %cst_97 : f32 to vector<2x128xf32>
    %141 = arith.select %138, %140, %131 : vector<2x128xi1>, vector<2x128xf32>
    %c0_98 = arith.constant 0 : index
    %c9_99 = arith.constant 9 : index
    %c0_100 = arith.constant 0 : index
    %c0_101 = arith.constant 0 : index
    %142 = vector.load %arg3[%c0_98, %c9_99, %c0_100, %c0_101] : memref<1x15x2x128xf32, #tpu.memory_space<vmem>>, vector<1x1x2x128xf32>
    %143 = vector.shape_cast %142 : vector<1x1x2x128xf32> to vector<2x128xf32>
    %144 = arith.subf %143, %48 : vector<2x128xf32>
    %145 = math.exp %144 : vector<2x128xf32>
    %146 = arith.addf %136, %145 : vector<2x128xf32>
    %c9_i32 = arith.constant 9 : i32
    %147 = vector.broadcast %c9_i32 : i32 to vector<2x128xi32>
    %148 = arith.cmpi eq, %4, %147 : vector<2x128xi32>
    %149 = arith.select %148, %143, %139 : vector<2x128xi1>, vector<2x128xf32>
    %cst_102 = arith.constant 1.592360e+01 : f32
    %150 = vector.broadcast %cst_102 : f32 to vector<2x128xf32>
    %151 = arith.select %148, %150, %141 : vector<2x128xi1>, vector<2x128xf32>
    %c0_103 = arith.constant 0 : index
    %c10_104 = arith.constant 10 : index
    %c0_105 = arith.constant 0 : index
    %c0_106 = arith.constant 0 : index
    %152 = vector.load %arg3[%c0_103, %c10_104, %c0_105, %c0_106] : memref<1x15x2x128xf32, #tpu.memory_space<vmem>>, vector<1x1x2x128xf32>
    %153 = vector.shape_cast %152 : vector<1x1x2x128xf32> to vector<2x128xf32>
    %154 = arith.subf %153, %48 : vector<2x128xf32>
    %155 = math.exp %154 : vector<2x128xf32>
    %156 = arith.addf %146, %155 : vector<2x128xf32>
    %c10_i32 = arith.constant 10 : i32
    %157 = vector.broadcast %c10_i32 : i32 to vector<2x128xi32>
    %158 = arith.cmpi eq, %4, %157 : vector<2x128xi32>
    %159 = arith.select %158, %153, %149 : vector<2x128xi1>, vector<2x128xf32>
    %cst_107 = arith.constant 4.312660e+01 : f32
    %160 = vector.broadcast %cst_107 : f32 to vector<2x128xf32>
    %161 = arith.select %158, %160, %151 : vector<2x128xi1>, vector<2x128xf32>
    %c0_108 = arith.constant 0 : index
    %c11_109 = arith.constant 11 : index
    %c0_110 = arith.constant 0 : index
    %c0_111 = arith.constant 0 : index
    %162 = vector.load %arg3[%c0_108, %c11_109, %c0_110, %c0_111] : memref<1x15x2x128xf32, #tpu.memory_space<vmem>>, vector<1x1x2x128xf32>
    %163 = vector.shape_cast %162 : vector<1x1x2x128xf32> to vector<2x128xf32>
    %164 = arith.subf %163, %48 : vector<2x128xf32>
    %165 = math.exp %164 : vector<2x128xf32>
    %166 = arith.addf %156, %165 : vector<2x128xf32>
    %c11_i32 = arith.constant 11 : i32
    %167 = vector.broadcast %c11_i32 : i32 to vector<2x128xi32>
    %168 = arith.cmpi eq, %4, %167 : vector<2x128xi32>
    %169 = arith.select %168, %163, %159 : vector<2x128xi1>, vector<2x128xf32>
    %cst_112 = arith.constant 4.484690e+01 : f32
    %170 = vector.broadcast %cst_112 : f32 to vector<2x128xf32>
    %171 = arith.select %168, %170, %161 : vector<2x128xi1>, vector<2x128xf32>
    %c0_113 = arith.constant 0 : index
    %c12_114 = arith.constant 12 : index
    %c0_115 = arith.constant 0 : index
    %c0_116 = arith.constant 0 : index
    %172 = vector.load %arg3[%c0_113, %c12_114, %c0_115, %c0_116] : memref<1x15x2x128xf32, #tpu.memory_space<vmem>>, vector<1x1x2x128xf32>
    %173 = vector.shape_cast %172 : vector<1x1x2x128xf32> to vector<2x128xf32>
    %174 = arith.subf %173, %48 : vector<2x128xf32>
    %175 = math.exp %174 : vector<2x128xf32>
    %176 = arith.addf %166, %175 : vector<2x128xf32>
    %c12_i32 = arith.constant 12 : i32
    %177 = vector.broadcast %c12_i32 : i32 to vector<2x128xi32>
    %178 = arith.cmpi eq, %4, %177 : vector<2x128xi32>
    %179 = arith.select %178, %173, %169 : vector<2x128xi1>, vector<2x128xf32>
    %cst_117 = arith.constant 4.860380e+01 : f32
    %180 = vector.broadcast %cst_117 : f32 to vector<2x128xf32>
    %181 = arith.select %178, %180, %171 : vector<2x128xi1>, vector<2x128xf32>
    %c0_118 = arith.constant 0 : index
    %c13_119 = arith.constant 13 : index
    %c0_120 = arith.constant 0 : index
    %c0_121 = arith.constant 0 : index
    %182 = vector.load %arg3[%c0_118, %c13_119, %c0_120, %c0_121] : memref<1x15x2x128xf32, #tpu.memory_space<vmem>>, vector<1x1x2x128xf32>
    %183 = vector.shape_cast %182 : vector<1x1x2x128xf32> to vector<2x128xf32>
    %184 = arith.subf %183, %48 : vector<2x128xf32>
    %185 = math.exp %184 : vector<2x128xf32>
    %186 = arith.addf %176, %185 : vector<2x128xf32>
    %c0_122 = arith.constant 0 : index
    %c14_123 = arith.constant 14 : index
    %c0_124 = arith.constant 0 : index
    %c0_125 = arith.constant 0 : index
    %187 = vector.load %arg3[%c0_122, %c14_123, %c0_124, %c0_125] : memref<1x15x2x128xf32, #tpu.memory_space<vmem>>, vector<1x1x2x128xf32>
    %188 = vector.shape_cast %187 : vector<1x1x2x128xf32> to vector<2x128xf32>
    %189 = arith.subf %188, %48 : vector<2x128xf32>
    %190 = math.exp %189 : vector<2x128xf32>
    %191 = arith.addf %186, %190 : vector<2x128xf32>
    %c14_i32 = arith.constant 14 : i32
    %192 = vector.broadcast %c14_i32 : i32 to vector<2x128xi32>
    %193 = arith.cmpi eq, %4, %192 : vector<2x128xi32>
    %194 = arith.select %193, %188, %179 : vector<2x128xi1>, vector<2x128xf32>
    %cst_126 = arith.constant 2.710570e+01 : f32
    %195 = vector.broadcast %cst_126 : f32 to vector<2x128xf32>
    %196 = arith.select %193, %195, %181 : vector<2x128xi1>, vector<2x128xf32>
    %197 = math.log %191 : vector<2x128xf32>
    %198 = arith.addf %197, %48 : vector<2x128xf32>
    %c1_i32_127 = arith.constant 1 : i32
    %199 = arith.muli %arg1, %c1_i32_127 : i32
    %200 = arith.addi %199, %arg2 : i32
    %c2_i32_128 = arith.constant 2 : i32
    %201 = arith.muli %200, %c2_i32_128 : i32
    %c2_i32_129 = arith.constant 2 : i32
    %202 = arith.subi %c2_i32_129, %201 : i32
    %203 = tpu.iota {dimensions = array<i32: 0>} : vector<2x128xi32>
    %204 = vector.broadcast %202 : i32 to vector<2x128xi32>
    %205 = arith.cmpi slt, %203, %204 : vector<2x128xi32>
    %c13_i32 = arith.constant 13 : i32
    %206 = vector.broadcast %c13_i32 : i32 to vector<2x128xi32>
    %207 = arith.cmpi ne, %4, %206 : vector<2x128xi32>
    %208 = arith.andi %205, %207 : vector<2x128xi1>
    %209 = arith.subf %198, %194 : vector<2x128xf32>
    %cst_130 = arith.constant 0.000000e+00 : f32
    %210 = vector.broadcast %cst_130 : f32 to vector<2x128xf32>
    %211 = arith.select %208, %209, %210 : vector<2x128xi1>, vector<2x128xf32>
    %cst_131 = arith.constant 0.000000e+00 : f32
    %212 = vector.broadcast %cst_131 : f32 to vector<2x128xf32>
    %213 = arith.select %208, %196, %212 : vector<2x128xi1>, vector<2x128xf32>
    %214 = arith.mulf %213, %211 : vector<2x128xf32>
    %c0_132 = arith.constant 0 : index
    %c0_133 = arith.constant 0 : index
    %215 = vector.load %arg7[%c0_132, %c0_133] : memref<2x128xf32, #tpu.memory_space<vmem>>, vector<2x128xf32>
    %216 = arith.addf %215, %214 : vector<2x128xf32>
    %c0_134 = arith.constant 0 : index
    %c0_135 = arith.constant 0 : index
    %217 = vector.load %arg7[%c0_134, %c0_135] : memref<2x128xf32, #tpu.memory_space<vmem>>, vector<2x128xf32>
    tpu.vector_store %arg7[%c0_134, %c0_135], %216 {strides = array<i32>} : memref<2x128xf32, #tpu.memory_space<vmem>>, vector<2x128xf32>,
    %c0_136 = arith.constant 0 : index
    %c0_137 = arith.constant 0 : index
    %218 = vector.load %arg8[%c0_136, %c0_137] : memref<2x128xf32, #tpu.memory_space<vmem>>, vector<2x128xf32>
    %219 = arith.addf %218, %213 : vector<2x128xf32>
    %c0_138 = arith.constant 0 : index
    %c0_139 = arith.constant 0 : index
    %220 = vector.load %arg8[%c0_138, %c0_139] : memref<2x128xf32, #tpu.memory_space<vmem>>, vector<2x128xf32>
    tpu.vector_store %arg8[%c0_138, %c0_139], %219 {strides = array<i32>} : memref<2x128xf32, #tpu.memory_space<vmem>>, vector<2x128xf32>,
    %c0_i32_140 = arith.constant 0 : i32
    %221 = arith.cmpi eq, %arg2, %c0_i32_140 : i32
    %222 = arith.extui %221 : i1 to i32
    %c0_i32_141 = arith.constant 0 : i32
    %223 = arith.cmpi ne, %222, %c0_i32_141 : i32
    scf.if %223 {
      %c0_142 = arith.constant 0 : index
      %c0_143 = arith.constant 0 : index
      %224 = vector.load %arg7[%c0_142, %c0_143] : memref<2x128xf32, #tpu.memory_space<vmem>>, vector<2x128xf32>
      %cst_144 = arith.constant dense<0.000000e+00> : vector<128xf32>
      %225 = vector.multi_reduction <add>, %224, %cst_144 [0] : vector<2x128xf32> to vector<128xf32>
      %226 = vector.shape_cast %225 : vector<128xf32> to vector<1x128xf32>
      %227 = vector.shape_cast %226 : vector<1x128xf32> to vector<1x1x128xf32>
      %c0_145 = arith.constant 0 : index
      %c0_146 = arith.constant 0 : index
      %c0_147 = arith.constant 0 : index
      %228 = vector.load %arg5[%c0_145, %c0_146, %c0_147] : memref<1x1x128xf32, #tpu.memory_space<vmem>>, vector<1x1x128xf32>
      tpu.vector_store %arg5[%c0_145, %c0_146, %c0_147], %227 {strides = array<i32>} : memref<1x1x128xf32, #tpu.memory_space<vmem>>, vector<1x1x128xf32>,
      %c0_148 = arith.constant 0 : index
      %c0_149 = arith.constant 0 : index
      %229 = vector.load %arg8[%c0_148, %c0_149] : memref<2x128xf32, #tpu.memory_space<vmem>>, vector<2x128xf32>
      %cst_150 = arith.constant dense<0.000000e+00> : vector<128xf32>
      %230 = vector.multi_reduction <add>, %229, %cst_150 [0] : vector<2x128xf32> to vector<128xf32>
      %231 = vector.shape_cast %230 : vector<128xf32> to vector<1x128xf32>
      %232 = vector.shape_cast %231 : vector<1x128xf32> to vector<1x1x128xf32>
      %c0_151 = arith.constant 0 : index
      %c0_152 = arith.constant 0 : index
      %c0_153 = arith.constant 0 : index
      %233 = vector.load %arg6[%c0_151, %c0_152, %c0_153] : memref<1x1x128xf32, #tpu.memory_space<vmem>>, vector<1x1x128xf32>
      tpu.vector_store %arg6[%c0_151, %c0_152, %c0_153], %232 {strides = array<i32>} : memref<1x1x128xf32, #tpu.memory_space<vmem>>, vector<1x1x128xf32>,
    } else {
    }
    return
  }
  func.func @transform_0(%arg0: i32, %arg1: i32, %arg2: i32) -> (i32, i32, i32, i32) {
    %c1_i32 = arith.constant 1 : i32
    %0 = arith.muli %arg1, %c1_i32 : i32
    %1 = arith.addi %0, %arg2 : i32
    %c0_i32 = arith.constant 0 : i32
    %2 = arith.minsi %1, %c0_i32 : i32
    %c0_i32_0 = arith.constant 0 : i32
    %c0_i32_1 = arith.constant 0 : i32
    %c0_i32_2 = arith.constant 0 : i32
    return %arg0, %c0_i32_0, %2, %c0_i32_1 : i32, i32, i32, i32
  }
  func.func @transform_1(%arg0: i32, %arg1: i32, %arg2: i32) -> (i32, i32, i32, i32) {
    %c1_i32 = arith.constant 1 : i32
    %0 = arith.muli %arg1, %c1_i32 : i32
    %1 = arith.addi %0, %arg2 : i32
    %c0_i32 = arith.constant 0 : i32
    %2 = arith.minsi %1, %c0_i32 : i32
    %c0_i32_0 = arith.constant 0 : i32
    %c0_i32_1 = arith.constant 0 : i32
    %c0_i32_2 = arith.constant 0 : i32
    return %arg0, %c0_i32_0, %2, %c0_i32_1 : i32, i32, i32, i32
  }
  func.func @transform_2(%arg0: i32, %arg1: i32, %arg2: i32) -> (i32, i32, i32) {
    %c1_i32 = arith.constant 1 : i32
    %0 = arith.muli %arg0, %c1_i32 : i32
    %1 = arith.addi %0, %arg1 : i32
    %c0_i32 = arith.constant 0 : i32
    %c0_i32_0 = arith.constant 0 : i32
    %c0_i32_1 = arith.constant 0 : i32
    return %1, %c0_i32, %c0_i32_0 : i32, i32, i32
  }
  func.func @transform_3(%arg0: i32, %arg1: i32, %arg2: i32) -> (i32, i32, i32) {
    %c1_i32 = arith.constant 1 : i32
    %0 = arith.muli %arg0, %c1_i32 : i32
    %1 = arith.addi %0, %arg1 : i32
    %c0_i32 = arith.constant 0 : i32
    %c0_i32_0 = arith.constant 0 : i32
    %c0_i32_1 = arith.constant 0 : i32
    return %1, %c0_i32, %c0_i32_0 : i32, i32, i32
  }
}

</mosaic_0001>

<llo_original>
// kernel: tpu_custom_call.1
$region0: #{tpu_custom_call.1}
  #allocation0 [shape = 'u32[]', space=smem, size = 0x4, offset = 0x4, fixed_abs, tag = 'smem constant byte address 0x4 - core index']
  #allocation1 [shape = 'u32[144,128]{1,0:T(1,128)}', space=vmem, size = 0x12000, scoped, tag = 'internal scratch']
  #allocation2 [shape = 'f32[2,128]{1,0:T(2,128)}', space=vmem, size = 0x400, scoped, tag = 'scratch operand']
  #allocation3 [shape = 'f32[2,128]{1,0:T(2,128)}', space=vmem, size = 0x400, scoped, tag = 'scratch operand']
  %s0 = inlined_call_operand.hbm [shape: f32[2,15,2,128], index: 0, kind: input, shape index: {}]
  %s1 = inlined_call_operand.hbm [shape: s32[2,1,2,128], index: 1, kind: input, shape index: {}]
  %s2 = inlined_call_operand.hbm [shape: f32[2,1,128], index: 2, kind: output, shape index: {0}]
  %s3 = inlined_call_operand.hbm [shape: f32[2,1,128], index: 3, kind: output, shape index: {1}]
  %4 = xla_tuple %s2, %s3
  %s5 = sld [smem:[#allocation0]]
  $region65: #{tpu_custom_call.1} parent=0
    _
  %s7 = ssub.s32 1, %s5
  %s8 = scalar_select 0, %s7, %s5
  $region1: #{tpu_custom_call.1} parent=0
    #allocation4 [shape = 'u8[30720]{0}', space=vmem, size = 0x7800, scoped, tag = 'input window, operand 0']
    #allocation5 [shape = 's32[2]{0}', space=sflag, size = 0x8, scoped, tag = 'scoped memory for tpu_custom_call.1']
    #allocation6 [shape = 's32[2]{0}', space=sflag, size = 0x8, scoped, tag = 'scoped memory for tpu_custom_call.1']
    #allocation7 [shape = 'u8[2048]{0}', space=vmem, size = 0x800, scoped, tag = 'input window, operand 1']
    #allocation8 [shape = 's32[2]{0}', space=sflag, size = 0x8, scoped, tag = 'scoped memory for tpu_custom_call.1']
    #allocation9 [shape = 'u8[1024]{0}', space=vmem, size = 0x400, scoped, tag = 'output window, operand 0']
    #allocation10 [shape = 'u8[1024]{0}', space=vmem, size = 0x400, scoped, tag = 'output window, operand 1']
    #allocation11 [shape = 's32[2]{0}', space=sflag, size = 0x8, scoped, tag = 'scoped memory for tpu_custom_call.1']
    %9 = vsyncpa [#allocation5], 0
    %s10 = scalar_lea.sflag [#allocation5], 1
    %11 = vsyncpa %s10, 0
    %12 = vsyncpa [#allocation8], 0
    %s13 = scalar_lea.sflag [#allocation8], 1
    %14 = vsyncpa %s13, 0
    %15 = vsyncpa [#allocation6], 0
    %s16 = scalar_lea.sflag [#allocation6], 1
    %17 = vsyncpa %s16, 0
    %18 = vsyncpa [#allocation11], 0
    %s19 = scalar_lea.sflag [#allocation11], 1
    %20 = vsyncpa %s19, 0
    loop: start=0, step=1, limit=4
    $region2: #{tpu_custom_call.1} parent=1 // loop_pre_header
      _
    $region3: #{tpu_custom_call.1} parent=1 // loop_header
      %s22 = sphi 0, %s26
      %p23 = scmp.ge.s32.totalorder %s22, 4
      %s29 = sphi 0, %s48
      %s30 = sphi 0, %s44
      %s31 = sphi 0, %s40
      %s32 = sphi 0, %s29
      %s33 = sphi 0, %s30
      %s34 = sphi 0, %s31
      %s35 = sphi 0, %s32
      %s36 = sphi 0, %s33
      %s37 = sphi 0, %s34
      %s59 = sphi 0, %s61
      %s62 = sphi 0, %s59
      %s63 = sphi 0, %s62
      %s79 = sphi 0, %s63
      %s93 = sphi 0, %s95
      %s96 = sphi 0, %s93
      %s97 = sphi 0, %s96
      %s113 = sphi 0, %s97
      %s121 = sphi 0, %s123
      %s124 = sphi 0, %s121
      %s125 = sphi 0, %s124
      %s141 = sphi 0, %s125
      %s149 = sphi 0, %s151
      %s152 = sphi 0, %s149
      %s153 = sphi 0, %s152
      %s169 = sphi 0, %s153
    $region4: #{tpu_custom_call.1} parent=1 // loop_header_branch
      %25 = sbr.rel (%p23) target = $region8
    $region5: #{tpu_custom_call.1} parent=1 // loop_body
      %s27 = ssub.s32 %s22, 1
      %s28 = ssub.s32 %s22, 2
      %s38 = sadd.s32 1, %s31
      %p39 = scmp.ge.s32.totalorder %s38, 1
      %s40 = scalar_select %p39, 0, %s38
      %s41 = sadd.s32 1, %s30
      %s42 = scalar_select %p39, %s41, %s30
      %p43 = scmp.ge.s32.totalorder %s42, 1
      %s44 = scalar_select %p43, 0, %s42
      %s45 = sadd.s32 1, %s29
      %s46 = scalar_select %p43, %s45, %s29
      %p47 = scmp.ge.s32.totalorder %s46, 2
      %s48 = scalar_select %p47, 0, %s46
      %s49 = sadd.s32 %s30, %s31
      %p50 = scmp.lt.s32.totalorder %s49, 0
      %s51 = scalar_select %p50, %s49, 0
      %s52 = sadd.s32 %s44, %s40
      %p53 = scmp.lt.s32.totalorder %s52, 0
      %s54 = scalar_select %p53, %s52, 0
      %s55 = ssub.s32 %s29, %s48
      %s56 = ssub.s32 %s51, %s54
      %s57 = sor.u32 %s55, %s56
      %p58 = scmp.eq.s32.totalorder %s57, 0
      %s60 = sadd.s32 %s59, 1
      %s61 = scalar_select %p58, %s59, %s60
      %p64 = pneg %p58
      %p65 = scmp.eq.s32.totalorder %s22, 1
      %p66 = por %p64, %p65
      %p67 = scmp.ne.s32.totalorder %s59, %s62
      %p68 = scmp.eq.s32.totalorder %s22, 0
      %p69 = por %p67, %p68
      %p70 = scmp.ne.s32.totalorder %s59, %s62
      %p71 = scmp.eq.s32.totalorder %s27, 1
      %p72 = por %p70, %p71
      %p73 = scmp.ne.s32.totalorder %s62, %s63
      %p74 = scmp.eq.s32.totalorder %s27, 0
      %p75 = por %p73, %p74
      %p76 = scmp.ne.s32.totalorder %s62, %s63
      %p77 = scmp.eq.s32.totalorder %s28, 1
      %p78 = por %p76, %p77
      %p80 = scmp.ne.s32.totalorder %s63, %s79
      %p81 = scmp.eq.s32.totalorder %s28, 0
      %p82 = por %p80, %p81
      %s83 = sadd.s32 %s30, %s31
      %p84 = scmp.lt.s32.totalorder %s83, 0
      %s85 = scalar_select %p84, %s83, 0
      %s86 = sadd.s32 %s44, %s40
      %p87 = scmp.lt.s32.totalorder %s86, 0
      %s88 = scalar_select %p87, %s86, 0
      %s89 = ssub.s32 %s29, %s48
      %s90 = ssub.s32 %s85, %s88
      %s91 = sor.u32 %s89, %s90
      %p92 = scmp.eq.s32.totalorder %s91, 0
      %s94 = sadd.s32 %s93, 1
      %s95 = scalar_select %p92, %s93, %s94
      %p98 = pneg %p92
      %p99 = scmp.eq.s32.totalorder %s22, 1
      %p100 = por %p98, %p99
      %p101 = scmp.ne.s32.totalorder %s93, %s96
      %p102 = scmp.eq.s32.totalorder %s22, 0
      %p103 = por %p101, %p102
      %p104 = scmp.ne.s32.totalorder %s93, %s96
      %p105 = scmp.eq.s32.totalorder %s27, 1
      %p106 = por %p104, %p105
      %p107 = scmp.ne.s32.totalorder %s96, %s97
      %p108 = scmp.eq.s32.totalorder %s27, 0
      %p109 = por %p107, %p108
      %p110 = scmp.ne.s32.totalorder %s96, %s97
      %p111 = scmp.eq.s32.totalorder %s28, 1
      %p112 = por %p110, %p111
      %p114 = scmp.ne.s32.totalorder %s97, %s113
      %p115 = scmp.eq.s32.totalorder %s28, 0
      %p116 = por %p114, %p115
      %s117 = sadd.s32 %s29, %s30
      %s118 = sadd.s32 %s48, %s44
      %s119 = ssub.s32 %s117, %s118
      %p120 = scmp.eq.s32.totalorder %s119, 0
      %s122 = sadd.s32 %s121, 1
      %s123 = scalar_select %p120, %s121, %s122
      %p126 = pneg %p120
      %p127 = scmp.eq.s32.totalorder %s22, 1
      %p128 = por %p126, %p127
      %p129 = scmp.ne.s32.totalorder %s121, %s124
      %p130 = scmp.eq.s32.totalorder %s22, 0
      %p131 = por %p129, %p130
      %p132 = scmp.ne.s32.totalorder %s121, %s124
      %p133 = scmp.eq.s32.totalorder %s27, 1
      %p134 = por %p132, %p133
      %p135 = scmp.ne.s32.totalorder %s124, %s125
      %p136 = scmp.eq.s32.totalorder %s27, 0
      %p137 = por %p135, %p136
      %p138 = scmp.ne.s32.totalorder %s124, %s125
      %p139 = scmp.eq.s32.totalorder %s28, 1
      %p140 = por %p138, %p139
      %p142 = scmp.ne.s32.totalorder %s125, %s141
      %p143 = scmp.eq.s32.totalorder %s28, 0
      %p144 = por %p142, %p143
      %s145 = sadd.s32 %s29, %s30
      %s146 = sadd.s32 %s48, %s44
      %s147 = ssub.s32 %s145, %s146
      %p148 = scmp.eq.s32.totalorder %s147, 0
      %s150 = sadd.s32 %s149, 1
      %s151 = scalar_select %p148, %s149, %s150
      %p154 = pneg %p148
      %p155 = scmp.eq.s32.totalorder %s22, 1
      %p156 = por %p154, %p155
      %p157 = scmp.ne.s32.totalorder %s149, %s152
      %p158 = scmp.eq.s32.totalorder %s22, 0
      %p159 = por %p157, %p158
      %p160 = scmp.ne.s32.totalorder %s149, %s152
      %p161 = scmp.eq.s32.totalorder %s27, 1
      %p162 = por %p160, %p161
      %p163 = scmp.ne.s32.totalorder %s152, %s153
      %p164 = scmp.eq.s32.totalorder %s27, 0
      %p165 = por %p163, %p164
      %p166 = scmp.ne.s32.totalorder %s152, %s153
      %p167 = scmp.eq.s32.totalorder %s28, 1
      %p168 = por %p166, %p167
      %p170 = scmp.ne.s32.totalorder %s153, %s169
      %p171 = scmp.eq.s32.totalorder %s28, 0
      %p172 = por %p170, %p171
      %p173 = scmp.le.s32.totalorder 1, %s22
      %p174 = scmp.lt.s32.totalorder %s22, 3
      %p175 = pnand %p173, %p174
      %p176 = pneg %p175
      // Predicated region
      $region9: #{tpu_custom_call.1} parent=5 // pred_check
        _
      $region10: #{tpu_custom_call.1} parent=5 // pred_check_branch
        %178 = sbr.rel (%p175) target = $region12
      $region11: #{tpu_custom_call.1} parent=5 // pred_region
        %s179 = ssub.s32 %s22, 1
      $region12: #{tpu_custom_call.1} parent=5 // pred_fallthru
        _
      %p180 = scmp.lt.s32.totalorder %s22, 2
      // Predicated region
      $region13: #{tpu_custom_call.1} parent=5 // pred_check
        %p181 = pneg %p180
      $region14: #{tpu_custom_call.1} parent=5 // pred_check_branch
        %183 = sbr.rel (%p181) target = $region16
      $region15: #{tpu_custom_call.1} parent=5 // pred_region
        // Predicated region
        $region17: #{tpu_custom_call.1} parent=15 // pred_check
          %p184 = pneg %p69
        $region18: #{tpu_custom_call.1} parent=15 // pred_check_branch
          %186 = sbr.rel (%p184) target = $region20
        $region19: #{tpu_custom_call.1} parent=15 // pred_region
          %s187 = sand.u32 %s59, 1
          %s188 = scalar_lea.sflag [#allocation5], %s187
          %s189 = sand.u32 %s59, 1
          %s190 = smul.addr %s189, 30
          %s191 = scalar_lea.vmem [#allocation4], %s190
          %s192 = sadd.s32 %s30, %s31
          %p193 = scmp.lt.s32.totalorder %s192, 0
          %s194 = scalar_select %p193, %s192, 0
          %s196 = ssub.s32 480, 480
          %197 = vsyncadd %s188, %s196
          %s198 = smul.addr %s29, 15
          %s199 = sadd.s32 %s194, %s198
          %s200 = smul.addr %s199, 32
          %s201 = scalar_lea.hbm %s0, %s200
          %s202 = sshll.u32 %s191, 4
          %s203 = int_to_ptr.vmem [resolvable:$true] %s202
          %208 = dma.hbm_to_vmem [thread:$0]  %s201, 480, %s203, %s188, 32, 32, 2
        $region20: #{tpu_custom_call.1} parent=15 // pred_fallthru
          _
        // Predicated region
        $region21: #{tpu_custom_call.1} parent=15 // pred_check
          %p209 = pneg %p103
        $region22: #{tpu_custom_call.1} parent=15 // pred_check_branch
          %211 = sbr.rel (%p209) target = $region24
        $region23: #{tpu_custom_call.1} parent=15 // pred_region
          %s212 = sand.u32 %s93, 1
          %s213 = scalar_lea.sflag [#allocation8], %s212
          %s214 = sand.u32 %s93, 1
          %s215 = smul.addr %s214, 2
          %s216 = scalar_lea.vmem [#allocation7], %s215
          %s217 = sadd.s32 %s30, %s31
          %p218 = scmp.lt.s32.totalorder %s217, 0
          %s219 = scalar_select %p218, %s217, 0
          %s221 = ssub.s32 32, 32
          %222 = vsyncadd %s213, %s221
          %s223 = sadd.s32 %s219, %s29
          %s224 = smul.addr %s223, 32
          %s225 = scalar_lea.hbm %s1, %s224
          %s227 = sshll.u32 %s216, 4
          %s228 = int_to_ptr.vmem [resolvable:$true] %s227
          %230 = dma.hbm_to_vmem [thread:$0]  %s225, 32, %s228, %s213
        $region24: #{tpu_custom_call.1} parent=15 // pred_fallthru
          _
      $region16: #{tpu_custom_call.1} parent=5 // pred_fallthru
        _
      %p231 = scmp.le.s32.totalorder 1, %s22
      %p232 = scmp.lt.s32.totalorder %s22, 3
      %p233 = pnand %p231, %p232
      %p234 = pneg %p233
      // Predicated region
      $region25: #{tpu_custom_call.1} parent=5 // pred_check
        _
      $region26: #{tpu_custom_call.1} parent=5 // pred_check_branch
        %236 = sbr.rel (%p233) target = $region28
      $region27: #{tpu_custom_call.1} parent=5 // pred_region
        %s237 = ssub.s32 %s22, 1
        %s238 = sand.u32 %s62, 1
        %s239 = scalar_lea.sflag [#allocation5], %s238
        %s240 = sand.u32 %s62, 1
        %s241 = smul.addr %s240, 30
        %s242 = scalar_lea.vmem [#allocation4], %s241
        // Predicated region
        $region29: #{tpu_custom_call.1} parent=27 // pred_check
          %p243 = pneg %p75
        $region30: #{tpu_custom_call.1} parent=27 // pred_check_branch
          %245 = sbr.rel (%p243) target = $region32
        $region31: #{tpu_custom_call.1} parent=27 // pred_region
          %246 = dma.done %s239, 480
        $region32: #{tpu_custom_call.1} parent=27 // pred_fallthru
          _
        %s247 = sand.u32 %s96, 1
        %s248 = scalar_lea.sflag [#allocation8], %s247
        %s249 = sand.u32 %s96, 1
        %s250 = smul.addr %s249, 2
        %s251 = scalar_lea.vmem [#allocation7], %s250
        // Predicated region
        $region33: #{tpu_custom_call.1} parent=27 // pred_check
          %p252 = pneg %p109
        $region34: #{tpu_custom_call.1} parent=27 // pred_check_branch
          %254 = sbr.rel (%p252) target = $region36
        $region35: #{tpu_custom_call.1} parent=27 // pred_region
          %255 = dma.done %s248, 32
        $region36: #{tpu_custom_call.1} parent=27 // pred_fallthru
          _
        %s256 = sand.u32 %s62, 1
        %s257 = scalar_lea.sflag [#allocation5], %s256
        %s258 = sand.u32 %s62, 1
        %s259 = smul.addr %s258, 30
        %s260 = scalar_lea.vmem [#allocation4], %s259
        %p261 = pneg %p75
        %p262 = pneg %p72
        %s263 = sand.u32 %s96, 1
        %s264 = scalar_lea.sflag [#allocation8], %s263
        %s265 = sand.u32 %s96, 1
        %s266 = smul.addr %s265, 2
        %s267 = scalar_lea.vmem [#allocation7], %s266
        %p268 = pneg %p109
        %p269 = pneg %p106
        %p270 = pneg %p137
        %p271 = pneg %p134
        %s272 = sand.u32 %s124, 1
        %s273 = scalar_lea.sflag [#allocation6], %s272
        %s274 = sand.u32 %s124, 1
        %s275 = scalar_lea.vmem [#allocation9], %s274
        %p276 = pneg %p165
        %p277 = pneg %p162
        %s278 = sand.u32 %s152, 1
        %s279 = scalar_lea.sflag [#allocation11], %s278
        %s280 = sand.u32 %s152, 1
        %s281 = scalar_lea.vmem [#allocation10], %s280
        %s282 = sadd.s32 %s33, %s34
        %p283 = scmp.lt.s32.totalorder %s282, 0
        %s284 = scalar_select %p283, %s282, 0
        %s285 = sadd.s32 %s33, %s34
        %p286 = scmp.lt.s32.totalorder %s285, 0
        %s287 = scalar_select %p286, %s285, 0
        %s288 = sadd.s32 %s32, %s33
        %s289 = sadd.s32 %s32, %s33
        %p290 = scmp.eq.s32.totalorder %s34, 0
        // Predicated region
        $region37: #{tpu_custom_call.1} parent=27 // pred_check
          %p291 = pneg %p290
        $region38: #{tpu_custom_call.1} parent=27 // pred_check_branch
          %293 = sbr.rel (%p291) target = $region40
        $region39: #{tpu_custom_call.1} parent=27 // pred_region
          %294 = vst [vmem:[#allocation2] sm:$0x3] 0.0
          %295 = vst [vmem:[#allocation3] sm:$0x3] 0.0
        $region40: #{tpu_custom_call.1} parent=27 // pred_fallthru
          _
        %v296 = vld [vmem:[%s251] sm:$0x3]
        %v297 = vld [vmem:[%s242] sm:$0x3]
        %s298 = scalar_lea.vmem %s242, 2 [#allocation4]
        %v299 = vld [vmem:[%s298] sm:$0x3]
        %v300 = vmax.f32 %v297, %v299
        %s301 = scalar_lea.vmem %s242, 4 [#allocation4]
        %v302 = vld [vmem:[%s301] sm:$0x3]
        %v303 = vmax.f32 %v300, %v302
        %s304 = scalar_lea.vmem %s242, 6 [#allocation4]
        %v305 = vld [vmem:[%s304] sm:$0x3]
        %v306 = vmax.f32 %v303, %v305
        %s307 = scalar_lea.vmem %s242, 8 [#allocation4]
        %v308 = vld [vmem:[%s307] sm:$0x3]
        %v309 = vmax.f32 %v306, %v308
        %s310 = scalar_lea.vmem %s242, 10 [#allocation4]
        %v311 = vld [vmem:[%s310] sm:$0x3]
        %v312 = vmax.f32 %v309, %v311
        %s313 = scalar_lea.vmem %s242, 12 [#allocation4]
        %v314 = vld [vmem:[%s313] sm:$0x3]
        %v315 = vmax.f32 %v312, %v314
        %s316 = scalar_lea.vmem %s242, 14 [#allocation4]
        %v317 = vld [vmem:[%s316] sm:$0x3]
        %v318 = vmax.f32 %v315, %v317
        %s319 = scalar_lea.vmem %s242, 16 [#allocation4]
        %v320 = vld [vmem:[%s319] sm:$0x3]
        %v321 = vmax.f32 %v318, %v320
        %s322 = scalar_lea.vmem %s242, 18 [#allocation4]
        %v323 = vld [vmem:[%s322] sm:$0x3]
        %v324 = vmax.f32 %v321, %v323
        %s325 = scalar_lea.vmem %s242, 20 [#allocation4]
        %v326 = vld [vmem:[%s325] sm:$0x3]
        %v327 = vmax.f32 %v324, %v326
        %s328 = scalar_lea.vmem %s242, 22 [#allocation4]
        %v329 = vld [vmem:[%s328] sm:$0x3]
        %v330 = vmax.f32 %v327, %v329
        %s331 = scalar_lea.vmem %s242, 24 [#allocation4]
        %v332 = vld [vmem:[%s331] sm:$0x3]
        %v333 = vmax.f32 %v330, %v332
        %s334 = scalar_lea.vmem %s242, 26 [#allocation4]
        %v335 = vld [vmem:[%s334] sm:$0x3]
        %v336 = vmax.f32 %v333, %v335
        %s337 = scalar_lea.vmem %s242, 28 [#allocation4]
        %v338 = vld [vmem:[%s337] sm:$0x3]
        %v339 = vmax.f32 %v336, %v338
        %v340 = vsub.f32 %v297, %v339
        %v341 = vmul.f32 %v340, 1.442695
        %v342 = vpow.pop %v341
        %v343 = vadd.f32 %v342, 0.0
        %vm344 = vcmp.eq.s32.totalorder %v296, 0
        %v345 = vsel %vm344, %v297, 0.0
        %v346 = vsel %vm344, 10.2249, 0.0
        %v347 = vsub.f32 %v299, %v339
        %v348 = vmul.f32 %v347, 1.442695
        %v349 = vpow.pop %v348
        %v350 = vadd.f32 %v343, %v349
        %vm351 = vcmp.eq.s32.totalorder %v296, 1
        %v352 = vsel %vm351, %v299, %v345
        %v353 = vsel %vm351, 9.6609, %v346
        %v354 = vsub.f32 %v302, %v339
        %v355 = vmul.f32 %v354, 1.442695
        %v356 = vpow.pop %v355
        %v357 = vadd.f32 %v350, %v356
        %vm358 = vcmp.eq.s32.totalorder %v296, 2
        %v359 = vsel %vm358, %v302, %v352
        %v360 = vsel %vm358, 32.8497, %v353
        %v361 = vsub.f32 %v305, %v339
        %v362 = vmul.f32 %v361, 1.442695
        %v363 = vpow.pop %v362
        %v364 = vadd.f32 %v357, %v363
        %vm365 = vcmp.eq.s32.totalorder %v296, 3
        %v366 = vsel %vm365, %v305, %v359
        %v367 = vsel %vm365, 6.0635, %v360
        %v368 = vsub.f32 %v308, %v339
        %v369 = vmul.f32 %v368, 1.442695
        %v370 = vpow.pop %v369
        %v371 = vadd.f32 %v364, %v370
        %vm372 = vcmp.eq.s32.totalorder %v296, 4
        %v373 = vsel %vm372, %v308, %v366
        %v374 = vsel %vm372, 48.1396, %v367
        %v375 = vsub.f32 %v311, %v339
        %v376 = vmul.f32 %v375, 1.442695
        %v377 = vpow.pop %v376
        %v378 = vadd.f32 %v371, %v377
        %vm379 = vcmp.eq.s32.totalorder %v296, 5
        %v380 = vsel %vm379, %v311, %v373
        %v381 = vsel %vm379, 44.9108, %v374
        %v382 = vsub.f32 %v314, %v339
        %v383 = vmul.f32 %v382, 1.442695
        %v384 = vpow.pop %v383
        %v385 = vadd.f32 %v378, %v384
        %vm386 = vcmp.eq.s32.totalorder %v296, 6
        %v387 = vsel %vm386, %v314, %v380
        %v388 = vsel %vm386, 4.4491, %v381
        %v389 = vsub.f32 %v317, %v339
        %v390 = vmul.f32 %v389, 1.442695
        %v391 = vpow.pop %v390
        %v392 = vadd.f32 %v385, %v391
        %vm393 = vcmp.eq.s32.totalorder %v296, 7
        %v394 = vsel %vm393, %v317, %v387
        %v395 = vsel %vm393, 3.1748, %v388
        %v396 = vsub.f32 %v320, %v339
        %v397 = vmul.f32 %v396, 1.442695
        %v398 = vpow.pop %v397
        %v399 = vadd.f32 %v392, %v398
        %vm400 = vcmp.eq.s32.totalorder %v296, 8
        %v401 = vsel %vm400, %v320, %v394
        %v402 = vsel %vm400, 43.9271, %v395
        %v403 = vsub.f32 %v323, %v339
        %v404 = vmul.f32 %v403, 1.442695
        %v405 = vpow.pop %v404
        %v406 = vadd.f32 %v399, %v405
        %vm407 = vcmp.eq.s32.totalorder %v296, 9
        %v408 = vsel %vm407, %v323, %v401
        %v409 = vsel %vm407, 15.9236, %v402
        %v410 = vsub.f32 %v326, %v339
        %v411 = vmul.f32 %v410, 1.442695
        %v412 = vpow.pop %v411
        %v413 = vadd.f32 %v406, %v412
        %vm414 = vcmp.eq.s32.totalorder %v296, 10
        %v415 = vsel %vm414, %v326, %v408
        %v416 = vsel %vm414, 43.1266, %v409
        %v417 = vsub.f32 %v329, %v339
        %v418 = vmul.f32 %v417, 1.442695
        %v419 = vpow.pop %v418
        %v420 = vadd.f32 %v413, %v419
        %vm421 = vcmp.eq.s32.totalorder %v296, 11
        %v422 = vsel %vm421, %v329, %v415
        %v423 = vsel %vm421, 44.8469, %v416
        %v424 = vsub.f32 %v332, %v339
        %v425 = vmul.f32 %v424, 1.442695
        %v426 = vpow.pop %v425
        %v427 = vadd.f32 %v420, %v426
        %vm428 = vcmp.eq.s32.totalorder %v296, 12
        %v429 = vsel %vm428, %v332, %v422
        %v430 = vsel %vm428, 48.6038, %v423
        %v431 = vsub.f32 %v335, %v339
        %v432 = vmul.f32 %v431, 1.442695
        %v433 = vpow.pop %v432
        %v434 = vadd.f32 %v427, %v433
        %v435 = vsub.f32 %v338, %v339
        %v436 = vmul.f32 %v435, 1.442695
        %v437 = vpow.pop %v436
        %v438 = vadd.f32 %v434, %v437
        %vm439 = vcmp.eq.s32.totalorder %v296, 14
        %v440 = vsel %vm439, %v338, %v429
        %v441 = vsel %vm439, 27.1057, %v430
        %v442 = vlog2.pop %v438
        %v443 = vmul.f32 %v442, 0.6931472
        %v444 = vadd.f32 %v443, %v339
        %s445 = sadd.s32 %s33, %s34
        %s446 = smul.u32 %s445, 2
        %s447 = ssub.s32 2, %s446
        %v448 = vlaneseq
        %v449 = vshrl.u32 %v448, 7
        %v450 = vstv %s447
        %vm451 = vcmp.lt.s32.totalorder %v449, %v450
        %vm452 = vcmp.ne.s32.totalorder %v296, 13
        %vm453 = vmand %vm451, %vm452
        %v454 = vsub.f32 %v444, %v440
        %v455 = vsel %vm453, %v454, 0.0
        %v456 = vsel %vm453, %v441, 0.0
        %v457 = vmul.f32 %v456, %v455
        %v458 = vld [vmem:[#allocation2] sm:$0x3]
        %v459 = vadd.f32 %v458, %v457
        %460 = vst [vmem:[#allocation2] sm:$0x3] %v459
        %v461 = vld [vmem:[#allocation3] sm:$0x3]
        %v462 = vadd.f32 %v461, %v456
        %463 = vst [vmem:[#allocation3] sm:$0x3] %v462
        // Predicated region
        $region41: #{tpu_custom_call.1} parent=27 // pred_check
          %p464 = pneg %p290
        $region42: #{tpu_custom_call.1} parent=27 // pred_check_branch
          %466 = sbr.rel (%p464) target = $region44
        $region43: #{tpu_custom_call.1} parent=27 // pred_region
          %v467 = vld [vmem:[#allocation2] sm:$0x3]
          %vm468 = vcmask 1041408
          %v469 = vsel %vm468, %v467, 0.0
          %v470 = vrot.slane %v469, 4
          %v471 = vadd.f32 %v469, %v470
          %v472 = vrot.slane %v471, 2
          %v473 = vadd.f32 %v471, %v472
          %v474 = vrot.slane %v473, 1
          %v475 = vadd.f32 %v473, %v474
          %476 = vst [vmem:[%s275] sm:$0x1] %v475
          %v477 = vld [vmem:[#allocation3] sm:$0x3]
          %v478 = vsel %vm468, %v477, 0.0
          %v479 = vrot.slane %v478, 4
          %v480 = vadd.f32 %v478, %v479
          %v481 = vrot.slane %v480, 2
          %v482 = vadd.f32 %v480, %v481
          %v483 = vrot.slane %v482, 1
          %v484 = vadd.f32 %v482, %v483
          %485 = vst [vmem:[%s281] sm:$0x1] %v484
        $region44: #{tpu_custom_call.1} parent=27 // pred_fallthru
          _
        %s486 = sand.u32 %s124, 1
        %s487 = scalar_lea.sflag [#allocation6], %s486
        %s488 = sand.u32 %s124, 1
        %s489 = scalar_lea.vmem [#allocation9], %s488
        %s490 = sand.u32 %s152, 1
        %s491 = scalar_lea.sflag [#allocation11], %s490
        %s492 = sand.u32 %s152, 1
        %s493 = scalar_lea.vmem [#allocation10], %s492
        // Predicated region
        $region45: #{tpu_custom_call.1} parent=27 // pred_check
          %p494 = pneg %p134
        $region46: #{tpu_custom_call.1} parent=27 // pred_check_branch
          %496 = sbr.rel (%p494) target = $region48
        $region47: #{tpu_custom_call.1} parent=27 // pred_region
          %s497 = sadd.s32 %s32, %s33
          %s499 = ssub.s32 16, 16
          %500 = vsyncadd %s487, %s499
          %s501 = smul.addr %s497, 16
          %s502 = scalar_lea.hbm %s2, %s501
          %s504 = sshll.u32 %s489, 4
          %s505 = int_to_ptr.vmem [resolvable:$true] %s504
          %507 = dma.vmem_to_hbm [thread:$0]  %s505, 16, %s502, %s487
        $region48: #{tpu_custom_call.1} parent=27 // pred_fallthru
          _
        // Predicated region
        $region49: #{tpu_custom_call.1} parent=27 // pred_check
          %p508 = pneg %p162
        $region50: #{tpu_custom_call.1} parent=27 // pred_check_branch
          %510 = sbr.rel (%p508) target = $region52
        $region51: #{tpu_custom_call.1} parent=27 // pred_region
          %s511 = sadd.s32 %s32, %s33
          %s513 = ssub.s32 16, 16
          %514 = vsyncadd %s491, %s513
          %s515 = smul.addr %s511, 16
          %s516 = scalar_lea.hbm %s3, %s515
          %s518 = sshll.u32 %s493, 4
          %s519 = int_to_ptr.vmem [resolvable:$true] %s518
          %521 = dma.vmem_to_hbm [thread:$0]  %s519, 16, %s516, %s491
        $region52: #{tpu_custom_call.1} parent=27 // pred_fallthru
          _
      $region28: #{tpu_custom_call.1} parent=5 // pred_fallthru
        _
      %p522 = scmp.le.s32.totalorder 2, %s22
      // Predicated region
      $region53: #{tpu_custom_call.1} parent=5 // pred_check
        %p523 = pneg %p522
      $region54: #{tpu_custom_call.1} parent=5 // pred_check_branch
        %525 = sbr.rel (%p523) target = $region56
      $region55: #{tpu_custom_call.1} parent=5 // pred_region
        %s526 = ssub.s32 %s22, 2
        // Predicated region
        $region57: #{tpu_custom_call.1} parent=55 // pred_check
          %p527 = pneg %p140
        $region58: #{tpu_custom_call.1} parent=55 // pred_check_branch
          %529 = sbr.rel (%p527) target = $region60
        $region59: #{tpu_custom_call.1} parent=55 // pred_region
          %s530 = sand.u32 %s125, 1
          %s531 = scalar_lea.sflag [#allocation6], %s530
          %s532 = sand.u32 %s125, 1
          %s533 = scalar_lea.vmem [#allocation9], %s532
          %534 = dma.done %s531, 16
        $region60: #{tpu_custom_call.1} parent=55 // pred_fallthru
          _
        // Predicated region
        $region61: #{tpu_custom_call.1} parent=55 // pred_check
          %p535 = pneg %p168
        $region62: #{tpu_custom_call.1} parent=55 // pred_check_branch
          %537 = sbr.rel (%p535) target = $region64
        $region63: #{tpu_custom_call.1} parent=55 // pred_region
          %s538 = sand.u32 %s153, 1
          %s539 = scalar_lea.sflag [#allocation11], %s538
          %s540 = sand.u32 %s153, 1
          %s541 = scalar_lea.vmem [#allocation10], %s540
          %542 = dma.done %s539, 16
        $region64: #{tpu_custom_call.1} parent=55 // pred_fallthru
          _
      $region56: #{tpu_custom_call.1} parent=5 // pred_fallthru
        _
    $region6: #{tpu_custom_call.1} parent=1 // loop_footer
      %s26 = sadd.s32 1, %s22
    $region7: #{tpu_custom_call.1} parent=1 // loop_footer_branch
      %21 = sbr.rel target = $region3
    $region8: #{tpu_custom_call.1} parent=1 // loop_exit
      _
    %543 = vsyncpa [#allocation5], 1
    %s544 = scalar_lea.sflag [#allocation5], 1
    %545 = vsyncpa %s544, 1
    %546 = vsyncpa [#allocation8], 1
    %s547 = scalar_lea.sflag [#allocation8], 1
    %548 = vsyncpa %s547, 1
    %549 = vsyncpa [#allocation6], 1
    %s550 = scalar_lea.sflag [#allocation6], 1
    %551 = vsyncpa %s550, 1
    %552 = vsyncpa [#allocation11], 1
    %s553 = scalar_lea.sflag [#allocation11], 1
    %554 = vsyncpa %s553, 1

</llo_original>
